<compile_context>
chip_gen: v5e
topology: v5e:2x2
jax: 0.10.0
libtpu: 0.0.40
codegen_flags: <defaults>
</compile_context>

<pallas_src>
import math
import functools

import jax
import jax.numpy as jnp
from jax.experimental import pallas as pl
from jax.experimental.pallas import tpu as pltpu


def mha_kernel(x_ref, mask_ref,
               wq_ref, bq_ref, wkv_ref, bkv_ref, wo_ref, bo_ref,
               out_ref, *, num_heads, d_k, q_tile):
    # x_ref:    (S, E)     full sequence of this batch element (K/V source)
    # mask_ref: (TQ, S)    query-tile rows of the (S, S) mask
    # wq_ref:   (E, E)     pre-transposed (in, out)
    # wkv_ref:  (E, 2E)    pre-transposed, [K | V] fused along the out dim
    # wo_ref:   (E, E)     pre-transposed (in, out)
    # b*_ref:   (1, out_dim)
    # out_ref:  (TQ, E)
    E = num_heads * d_k
    S = x_ref.shape[0]
    qi = pl.program_id(1)

    x = x_ref[...]                                           # (S, E)
    row0 = pl.multiple_of(qi * q_tile, q_tile)
    xq = x_ref[pl.ds(row0, q_tile), :]                       # (TQ, E) query rows

    # Projections (weights already (in, out): no transposes on the MXU path).
    q = jnp.dot(xq, wq_ref[...], preferred_element_type=jnp.float32) + bq_ref[0, :]
    kv = jnp.dot(x, wkv_ref[...], preferred_element_type=jnp.float32) + bkv_ref[0, :]
    k = kv[:, :E]                                            # (S, E)
    v = kv[:, E:]                                            # (S, E)

    # Head-batched layout (H, rows, d_k) built from cheap static lane slices.
    qh = jnp.stack([q[:, h * d_k:(h + 1) * d_k] for h in range(num_heads)], axis=0)
    kh = jnp.stack([k[:, h * d_k:(h + 1) * d_k] for h in range(num_heads)], axis=0)
    vh = jnp.stack([v[:, h * d_k:(h + 1) * d_k] for h in range(num_heads)], axis=0)

    scale = 1.0 / math.sqrt(d_k)
    logits = jnp.einsum('hqd,hkd->hqk', qh, kh,
                        preferred_element_type=jnp.float32) * scale      # (H, TQ, S)

    # masked_fill(mask == 1, -1e9), applied once for all heads.
    mask = mask_ref[...]                                                 # (TQ, S)
    logits = jnp.where((mask == 1.0)[None, :, :], jnp.float32(-1e9), logits)

    # exp(log_softmax(.)) == numerically stable softmax over the key axis.
    m = jnp.max(logits, axis=-1, keepdims=True)
    p = jnp.exp(logits - m)
    denom = jnp.sum(p, axis=-1, keepdims=True)
    # approx=True would route the divide to the EUP slot; kept exact for f32 parity.
    attn = p * pl.reciprocal(denom, approx=False)

    o_heads = jnp.einsum('hqk,hkd->hqd', attn, vh,
                         preferred_element_type=jnp.float32)             # (H, TQ, d_k)
    # Concat heads back along lanes == permute(0,2,1,3).reshape(N,S,E) in torch.
    o = jnp.concatenate([o_heads[h] for h in range(num_heads)], axis=-1)  # (TQ, E)

    out = jnp.dot(o, wo_ref[...], preferred_element_type=jnp.float32) + bo_ref[0, :]
    out_ref[...] = out.astype(out_ref.dtype)


def multi_head_attention(x, attn_mask, params, *, num_heads, q_tile=None):
    """x: (N, S, E) f32; attn_mask: (N, S, S) f32 (1.0 == masked) or None."""
    N, S, E = x.shape
    assert E % num_heads == 0, "embed_dim must be divisible by num_heads"
    d_k = E // num_heads
    wq, bq, wk, bk, wv, bv, wo, bo = params

    if attn_mask is None:
        attn_mask = jnp.zeros((N, S, S), jnp.float32)

    # Host-side weight prep (free): transpose to (in, out) layout, fuse K/V.
    wq_t = jnp.asarray(wq).T                                              # (E, E)
    wkv_t = jnp.concatenate([jnp.asarray(wk).T, jnp.asarray(wv).T], axis=1)  # (E, 2E)
    wo_t = jnp.asarray(wo).T                                              # (E, E)
    bq2 = jnp.asarray(bq).reshape(1, E)
    bkv2 = jnp.concatenate([jnp.asarray(bk), jnp.asarray(bv)]).reshape(1, 2 * E)
    bo2 = jnp.asarray(bo).reshape(1, E)

    # Query-tile size: a multiple of 8 (sublanes) that divides S; default 256
    # when S allows, else the full sequence.
    # TODO(synk): for very long S, split the K/V projection into its own pass
    # and stream K/V flash-style per kv tile instead of recomputing it per q tile.
    if q_tile is None:
        q_tile = 256 if (S % 256 == 0 and S > 256) else S
    if S % q_tile != 0 or (q_tile != S and q_tile % 8 != 0):
        q_tile = S
    n_q = S // q_tile

    kern = functools.partial(mha_kernel, num_heads=num_heads, d_k=d_k, q_tile=q_tile)

    flops = N * n_q * (2 * q_tile * E * E                 # Q projection
                       + 2 * S * E * (2 * E)              # fused K/V projection
                       + 4 * num_heads * q_tile * S * d_k  # QK^T + attn @ V
                       + 2 * q_tile * E * E)              # output projection
    transcendentals = N * num_heads * S * S
    bytes_accessed = 4 * (2 * N * S * E + N * S * S + 4 * E * E + 4 * E)

    return pl.pallas_call(
        kern,
        out_shape=jax.ShapeDtypeStruct((N, S, E), jnp.float32),
        grid_spec=pltpu.PrefetchScalarGridSpec(
            num_scalar_prefetch=0,
            grid=(N, n_q),
            in_specs=[
                pl.BlockSpec((None, S, E), lambda n, qi: (n, 0, 0)),        # x
                pl.BlockSpec((None, q_tile, S), lambda n, qi: (n, qi, 0)),  # mask
                pl.BlockSpec((E, E), lambda n, qi: (0, 0)),                 # W_q^T
                pl.BlockSpec((1, E), lambda n, qi: (0, 0)),                 # b_q
                pl.BlockSpec((E, 2 * E), lambda n, qi: (0, 0)),             # W_kv^T
                pl.BlockSpec((1, 2 * E), lambda n, qi: (0, 0)),             # b_kv
                pl.BlockSpec((E, E), lambda n, qi: (0, 0)),                 # W_o^T
                pl.BlockSpec((1, E), lambda n, qi: (0, 0)),                 # b_o
            ],
            out_specs=pl.BlockSpec((None, q_tile, E), lambda n, qi: (n, qi, 0)),
        ),
        compiler_params=pltpu.CompilerParams(
            dimension_semantics=("parallel", "parallel"),
            vmem_limit_bytes=48 * 1024 * 1024,
        ),
        cost_estimate=pl.CostEstimate(
            flops=int(flops),
            transcendentals=int(transcendentals),
            bytes_accessed=int(bytes_accessed),
        ),
    )(x, attn_mask, wq_t, bq2, wkv_t, bkv2, wo_t, bo2)


def reference_mha(x, attn_mask, params, *, num_heads):
    """Pure-JAX replica of the PyTorch forward, for verification."""
    N, S, E = x.shape
    d_k = E // num_heads
    wq, bq, wk, bk, wv, bv, wo, bo = params

    def lin(w, b):
        return x.reshape(-1, E) @ w.T + b

    q = lin(wq, bq).reshape(N, S, num_heads, d_k).transpose(0, 2, 1, 3)
    k = lin(wk, bk).reshape(N, S, num_heads, d_k).transpose(0, 2, 1, 3)
    v = lin(wv, bv).reshape(N, S, num_heads, d_k).transpose(0, 2, 1, 3)
    logits = jnp.einsum("nhqd,nhkd->nhqk", q, k) / math.sqrt(d_k)
    logits = jnp.where(attn_mask[:, None, :, :] == 1.0, -1e9, logits)
    attn = jnp.exp(jax.nn.log_softmax(logits, axis=-1))
    o = jnp.einsum("nhqk,nhkd->nhqd", attn, v).transpose(0, 2, 1, 3).reshape(N, S, E)
    return o @ wo.T + bo


if __name__ == "__main__":
    def make_inputs(key, N, S, E, H):
        keys = jax.random.split(key, 10)
        scale = 1.0 / math.sqrt(E)
        wq = jax.random.normal(keys[0], (E, E), jnp.float32) * scale
        bq = jax.random.normal(keys[1], (E,), jnp.float32) * 0.01
        wk = jax.random.normal(keys[2], (E, E), jnp.float32) * scale
        bk = jax.random.normal(keys[3], (E,), jnp.float32) * 0.01
        wv = jax.random.normal(keys[4], (E, E), jnp.float32) * scale
        bv = jax.random.normal(keys[5], (E,), jnp.float32) * 0.01
        wo = jax.random.normal(keys[6], (E, E), jnp.float32) * scale
        bo = jax.random.normal(keys[7], (E,), jnp.float32) * 0.01
        params = (wq, bq, wk, bk, wv, bv, wo, bo)
        x = jax.random.normal(keys[8], (N, S, E), jnp.float32)
        # Boolean mask (1.0 == masked), as float32 to match mask.float() == 1.
        attn_mask = (jax.random.uniform(keys[9], (N, S, S)) < 0.2).astype(jnp.float32)
        return x, attn_mask, params

    key = jax.random.PRNGKey(0)
    k1, k2 = jax.random.split(key)

    # Case 1: module-sized shapes (batch=2, seq=8, embed=32, heads=4), one q tile.
    N, S, E, H = 2, 8, 32, 4
    x, attn_mask, params = make_inputs(k1, N, S, E, H)
    out = jax.block_until_ready(multi_head_attention(x, attn_mask, params, num_heads=H))
    ref = reference_mha(x, attn_mask, params, num_heads=H)
    assert out.shape == (N, S, E)
    assert jnp.allclose(out, ref, atol=1e-4, rtol=1e-4), \
        f"case1 max abs err {jnp.max(jnp.abs(out - ref))}"

    # Case 2: exercise the (batch, q-tile) grid with more than one query tile.
    N, S, E, H = 2, 16, 32, 4
    x, attn_mask, params = make_inputs(k2, N, S, E, H)
    out = jax.block_until_ready(
        multi_head_attention(x, attn_mask, params, num_heads=H, q_tile=8))
    ref = reference_mha(x, attn_mask, params, num_heads=H)
    assert out.shape == (N, S, E)
    assert jnp.allclose(out, ref, atol=1e-4, rtol=1e-4), \
        f"case2 max abs err {jnp.max(jnp.abs(out - ref))}"

    print("KERNEL_OK")
</pallas_src>

<mosaic_0001>
module attributes {stable_mosaic.version = 11 : i64} {
  func.func @mha_kernel(%arg0: i32, %arg1: i32, %arg2: memref<1x8x32xf32, #tpu.memory_space<vmem>>, %arg3: memref<1x8x8xf32, #tpu.memory_space<vmem>>, %arg4: memref<32x32xf32, #tpu.memory_space<vmem>>, %arg5: memref<1x32xf32, #tpu.memory_space<vmem>>, %arg6: memref<32x64xf32, #tpu.memory_space<vmem>>, %arg7: memref<1x64xf32, #tpu.memory_space<vmem>>, %arg8: memref<32x32xf32, #tpu.memory_space<vmem>>, %arg9: memref<1x32xf32, #tpu.memory_space<vmem>>, %arg10: memref<1x8x32xf32, #tpu.memory_space<vmem>>) attributes {dimension_semantics = [#tpu.dimension_semantics<parallel>, #tpu.dimension_semantics<parallel>], iteration_bounds = array<i64: 2, 1>, scalar_prefetch = 0 : i64, scratch_operands = 0 : i64, tpu.core_type = #tpu.core_type<tc>, window_params = [{transform_indices = @transform_0, window_bounds = array<i64: 1, 8, 32>}, {transform_indices = @transform_1, window_bounds = array<i64: 1, 8, 8>}, {pipeline_mode = #tpu.pipeline_mode<synchronous>, transform_indices = @transform_2, window_bounds = array<i64: 32, 32>}, {pipeline_mode = #tpu.pipeline_mode<synchronous>, transform_indices = @transform_3, window_bounds = array<i64: 1, 32>}, {pipeline_mode = #tpu.pipeline_mode<synchronous>, transform_indices = @transform_4, window_bounds = array<i64: 32, 64>}, {pipeline_mode = #tpu.pipeline_mode<synchronous>, transform_indices = @transform_5, window_bounds = array<i64: 1, 64>}, {pipeline_mode = #tpu.pipeline_mode<synchronous>, transform_indices = @transform_6, window_bounds = array<i64: 32, 32>}, {pipeline_mode = #tpu.pipeline_mode<synchronous>, transform_indices = @transform_7, window_bounds = array<i64: 1, 32>}, {transform_indices = @transform_8, window_bounds = array<i64: 1, 8, 32>}]} {
    %c0 = arith.constant 0 : index
    %c0_0 = arith.constant 0 : index
    %c0_1 = arith.constant 0 : index
    %0 = vector.load %arg2[%c0, %c0_0, %c0_1] : memref<1x8x32xf32, #tpu.memory_space<vmem>>, vector<1x8x32xf32>
    %1 = vector.shape_cast %0 : vector<1x8x32xf32> to vector<8x32xf32>
    %c8_i32 = arith.constant 8 : i32
    %2 = arith.muli %arg1, %c8_i32 : i32
    %3 = tpu.assume_multiple %2, 8 : i32
    %c0_2 = arith.constant 0 : index
    %4 = arith.index_cast %3 : i32 to index
    %c0_3 = arith.constant 0 : index
    %5 = vector.load %arg2[%c0_2, %4, %c0_3] : memref<1x8x32xf32, #tpu.memory_space<vmem>>, vector<1x8x32xf32>
    %6 = vector.shape_cast %5 : vector<1x8x32xf32> to vector<8x32xf32>
    %c0_4 = arith.constant 0 : index
    %c0_5 = arith.constant 0 : index
    %7 = vector.load %arg4[%c0_4, %c0_5] : memref<32x32xf32, #tpu.memory_space<vmem>>, vector<32x32xf32>
    %cst = arith.constant dense<0.000000e+00> : vector<8x32xf32>
    %8 = tpu.matmul %6, %7, %cst {dimension_numbers = #tpu.dot_dimension_numbers<[1], [0], [0], [1], [0, 0, 1, 1], [], []>} : vector<8x32xf32>, vector<32x32xf32>, vector<8x32xf32> -> vector<8x32xf32>
    %c0_6 = arith.constant 0 : index
    %c0_7 = arith.constant 0 : index
    %9 = vector.load %arg5[%c0_6, %c0_7] : memref<1x32xf32, #tpu.memory_space<vmem>>, vector<1x32xf32>
    %10 = vector.shape_cast %9 : vector<1x32xf32> to vector<32xf32>
    %11 = vector.shape_cast %10 : vector<32xf32> to vector<1x32xf32>
    %12 = vector.broadcast %11 : vector<1x32xf32> to vector<8x32xf32>
    %13 = arith.addf %8, %12 : vector<8x32xf32>
    %c0_8 = arith.constant 0 : index
    %c0_9 = arith.constant 0 : index
    %14 = vector.load %arg6[%c0_8, %c0_9] : memref<32x64xf32, #tpu.memory_space<vmem>>, vector<32x64xf32>
    %cst_10 = arith.constant dense<0.000000e+00> : vector<8x64xf32>
    %15 = tpu.matmul %1, %14, %cst_10 {dimension_numbers = #tpu.dot_dimension_numbers<[1], [0], [0], [1], [0, 0, 1, 1], [], []>} : vector<8x32xf32>, vector<32x64xf32>, vector<8x64xf32> -> vector<8x64xf32>
    %c0_11 = arith.constant 0 : index
    %c0_12 = arith.constant 0 : index
    %16 = vector.load %arg7[%c0_11, %c0_12] : memref<1x64xf32, #tpu.memory_space<vmem>>, vector<1x64xf32>
    %17 = vector.shape_cast %16 : vector<1x64xf32> to vector<64xf32>
    %18 = vector.shape_cast %17 : vector<64xf32> to vector<1x64xf32>
    %19 = vector.broadcast %18 : vector<1x64xf32> to vector<8x64xf32>
    %20 = arith.addf %15, %19 : vector<8x64xf32>
    %21 = vector.extract_strided_slice %20 {offsets = [0, 0], sizes = [8, 32], strides = [1, 1]} : vector<8x64xf32> to vector<8x32xf32>
    %22 = vector.extract_strided_slice %20 {offsets = [0, 32], sizes = [8, 32], strides = [1, 1]} : vector<8x64xf32> to vector<8x32xf32>
    %23 = vector.extract_strided_slice %13 {offsets = [0, 0], sizes = [8, 8], strides = [1, 1]} : vector<8x32xf32> to vector<8x8xf32>
    %24 = vector.extract_strided_slice %13 {offsets = [0, 8], sizes = [8, 8], strides = [1, 1]} : vector<8x32xf32> to vector<8x8xf32>
    %25 = vector.extract_strided_slice %13 {offsets = [0, 16], sizes = [8, 8], strides = [1, 1]} : vector<8x32xf32> to vector<8x8xf32>
    %26 = vector.extract_strided_slice %13 {offsets = [0, 24], sizes = [8, 8], strides = [1, 1]} : vector<8x32xf32> to vector<8x8xf32>
    %27 = vector.shape_cast %23 : vector<8x8xf32> to vector<1x8x8xf32>
    %28 = vector.shape_cast %24 : vector<8x8xf32> to vector<1x8x8xf32>
    %29 = vector.shape_cast %25 : vector<8x8xf32> to vector<1x8x8xf32>
    %30 = vector.shape_cast %26 : vector<8x8xf32> to vector<1x8x8xf32>
    %31 = tpu.concatenate %27, %28, %29, %30 in 0 : vector<1x8x8xf32>, vector<1x8x8xf32>, vector<1x8x8xf32>, vector<1x8x8xf32> -> vector<4x8x8xf32>
    %32 = vector.extract_strided_slice %21 {offsets = [0, 0], sizes = [8, 8], strides = [1, 1]} : vector<8x32xf32> to vector<8x8xf32>
    %33 = vector.extract_strided_slice %21 {offsets = [0, 8], sizes = [8, 8], strides = [1, 1]} : vector<8x32xf32> to vector<8x8xf32>
    %34 = vector.extract_strided_slice %21 {offsets = [0, 16], sizes = [8, 8], strides = [1, 1]} : vector<8x32xf32> to vector<8x8xf32>
    %35 = vector.extract_strided_slice %21 {offsets = [0, 24], sizes = [8, 8], strides = [1, 1]} : vector<8x32xf32> to vector<8x8xf32>
    %36 = vector.shape_cast %32 : vector<8x8xf32> to vector<1x8x8xf32>
    %37 = vector.shape_cast %33 : vector<8x8xf32> to vector<1x8x8xf32>
    %38 = vector.shape_cast %34 : vector<8x8xf32> to vector<1x8x8xf32>
    %39 = vector.shape_cast %35 : vector<8x8xf32> to vector<1x8x8xf32>
    %40 = tpu.concatenate %36, %37, %38, %39 in 0 : vector<1x8x8xf32>, vector<1x8x8xf32>, vector<1x8x8xf32>, vector<1x8x8xf32> -> vector<4x8x8xf32>
    %41 = vector.extract_strided_slice %22 {offsets = [0, 0], sizes = [8, 8], strides = [1, 1]} : vector<8x32xf32> to vector<8x8xf32>
    %42 = vector.extract_strided_slice %22 {offsets = [0, 8], sizes = [8, 8], strides = [1, 1]} : vector<8x32xf32> to vector<8x8xf32>
    %43 = vector.extract_strided_slice %22 {offsets = [0, 16], sizes = [8, 8], strides = [1, 1]} : vector<8x32xf32> to vector<8x8xf32>
    %44 = vector.extract_strided_slice %22 {offsets = [0, 24], sizes = [8, 8], strides = [1, 1]} : vector<8x32xf32> to vector<8x8xf32>
    %45 = vector.shape_cast %41 : vector<8x8xf32> to vector<1x8x8xf32>
    %46 = vector.shape_cast %42 : vector<8x8xf32> to vector<1x8x8xf32>
    %47 = vector.shape_cast %43 : vector<8x8xf32> to vector<1x8x8xf32>
    %48 = vector.shape_cast %44 : vector<8x8xf32> to vector<1x8x8xf32>
    %49 = tpu.concatenate %45, %46, %47, %48 in 0 : vector<1x8x8xf32>, vector<1x8x8xf32>, vector<1x8x8xf32>, vector<1x8x8xf32> -> vector<4x8x8xf32>
    "tpu.trace_start"() <{level = 10 : i32, message = "hqd,hkd->hqk"}> : () -> ()
    %cst_13 = arith.constant dense<0.000000e+00> : vector<4x8x8xf32>
    %50 = tpu.matmul %31, %40, %cst_13 {dimension_numbers = #tpu.dot_dimension_numbers<[2], [2], [1], [1], [0, 0, 0, 1, 1, 1], [0], [0]>} : vector<4x8x8xf32>, vector<4x8x8xf32>, vector<4x8x8xf32> -> vector<4x8x8xf32>
    "tpu.trace_stop"() : () -> ()
    %cst_14 = arith.constant 0.353553385 : f32
    %51 = vector.broadcast %cst_14 : f32 to vector<4x8x8xf32>
    %52 = arith.mulf %50, %51 : vector<4x8x8xf32>
    %c0_15 = arith.constant 0 : index
    %c0_16 = arith.constant 0 : index
    %c0_17 = arith.constant 0 : index
    %53 = vector.load %arg3[%c0_15, %c0_16, %c0_17] : memref<1x8x8xf32, #tpu.memory_space<vmem>>, vector<1x8x8xf32>
    %54 = vector.shape_cast %53 : vector<1x8x8xf32> to vector<8x8xf32>
    %cst_18 = arith.constant 1.000000e+00 : f32
    %55 = vector.broadcast %cst_18 : f32 to vector<8x8xf32>
    %56 = arith.cmpf oeq, %54, %55 : vector<8x8xf32>
    %57 = vector.shape_cast %56 : vector<8x8xi1> to vector<1x8x8xi1>
    %cst_19 = arith.constant -1.000000e+09 : f32
    %58 = vector.shape_cast %57 : vector<1x8x8xi1> to vector<1x8x8xi1>
    %59 = vector.broadcast %58 : vector<1x8x8xi1> to vector<4x8x8xi1>
    %60 = vector.broadcast %cst_19 : f32 to vector<4x8x8xf32>
    %61 = arith.select %59, %60, %52 : vector<4x8x8xi1>, vector<4x8x8xf32>
    %cst_20 = arith.constant dense<0xFF800000> : vector<4x8xf32>
    %62 = vector.multi_reduction <maximumf>, %61, %cst_20 [2] : vector<4x8x8xf32> to vector<4x8xf32>
    %63 = vector.shape_cast %62 : vector<4x8xf32> to vector<4x8x1xf32>
    %64 = vector.broadcast %63 : vector<4x8x1xf32> to vector<4x8x8xf32>
    %65 = arith.subf %61, %64 : vector<4x8x8xf32>
    %66 = math.exp %65 : vector<4x8x8xf32>
    %cst_21 = arith.constant dense<0.000000e+00> : vector<4x8xf32>
    %67 = vector.multi_reduction <add>, %66, %cst_21 [2] : vector<4x8x8xf32> to vector<4x8xf32>
    %68 = vector.shape_cast %67 : vector<4x8xf32> to vector<4x8x1xf32>
    %69 = tpu.reciprocal %68 : vector<4x8x1xf32> -> vector<4x8x1xf32>
    %70 = vector.broadcast %69 : vector<4x8x1xf32> to vector<4x8x8xf32>
    %71 = arith.mulf %66, %70 : vector<4x8x8xf32>
    "tpu.trace_start"() <{level = 10 : i32, message = "hqk,hkd->hqd"}> : () -> ()
    %cst_22 = arith.constant dense<0.000000e+00> : vector<4x8x8xf32>
    %72 = tpu.matmul %71, %49, %cst_22 {dimension_numbers = #tpu.dot_dimension_numbers<[2], [1], [1], [2], [0, 0, 0, 1, 1, 2], [0], [0]>} : vector<4x8x8xf32>, vector<4x8x8xf32>, vector<4x8x8xf32> -> vector<4x8x8xf32>
    "tpu.trace_stop"() : () -> ()
    %73 = vector.extract_strided_slice %72 {offsets = [0, 0, 0], sizes = [1, 8, 8], strides = [1, 1, 1]} : vector<4x8x8xf32> to vector<1x8x8xf32>
    %74 = vector.shape_cast %73 : vector<1x8x8xf32> to vector<8x8xf32>
    %75 = vector.extract_strided_slice %72 {offsets = [1, 0, 0], sizes = [1, 8, 8], strides = [1, 1, 1]} : vector<4x8x8xf32> to vector<1x8x8xf32>
    %76 = vector.shape_cast %75 : vector<1x8x8xf32> to vector<8x8xf32>
    %77 = vector.extract_strided_slice %72 {offsets = [2, 0, 0], sizes = [1, 8, 8], strides = [1, 1, 1]} : vector<4x8x8xf32> to vector<1x8x8xf32>
    %78 = vector.shape_cast %77 : vector<1x8x8xf32> to vector<8x8xf32>
    %79 = vector.extract_strided_slice %72 {offsets = [3, 0, 0], sizes = [1, 8, 8], strides = [1, 1, 1]} : vector<4x8x8xf32> to vector<1x8x8xf32>
    %80 = vector.shape_cast %79 : vector<1x8x8xf32> to vector<8x8xf32>
    %81 = tpu.concatenate %74, %76, %78, %80 in 1 : vector<8x8xf32>, vector<8x8xf32>, vector<8x8xf32>, vector<8x8xf32> -> vector<8x32xf32>
    %c0_23 = arith.constant 0 : index
    %c0_24 = arith.constant 0 : index
    %82 = vector.load %arg8[%c0_23, %c0_24] : memref<32x32xf32, #tpu.memory_space<vmem>>, vector<32x32xf32>
    %cst_25 = arith.constant dense<0.000000e+00> : vector<8x32xf32>
    %83 = tpu.matmul %81, %82, %cst_25 {dimension_numbers = #tpu.dot_dimension_numbers<[1], [0], [0], [1], [0, 0, 1, 1], [], []>} : vector<8x32xf32>, vector<32x32xf32>, vector<8x32xf32> -> vector<8x32xf32>
    %c0_26 = arith.constant 0 : index
    %c0_27 = arith.constant 0 : index
    %84 = vector.load %arg9[%c0_26, %c0_27] : memref<1x32xf32, #tpu.memory_space<vmem>>, vector<1x32xf32>
    %85 = vector.shape_cast %84 : vector<1x32xf32> to vector<32xf32>
    %86 = vector.shape_cast %85 : vector<32xf32> to vector<1x32xf32>
    %87 = vector.broadcast %86 : vector<1x32xf32> to vector<8x32xf32>
    %88 = arith.addf %83, %87 : vector<8x32xf32>
    %c0_28 = arith.constant 0 : index
    %c0_29 = arith.constant 0 : index
    %c0_30 = arith.constant 0 : index
    %89 = vector.load %arg10[%c0_28, %c0_29, %c0_30] : memref<1x8x32xf32, #tpu.memory_space<vmem>>, vector<1x8x32xf32>
    %90 = vector.shape_cast %89 : vector<1x8x32xf32> to vector<8x32xf32>
    %91 = vector.shape_cast %88 : vector<8x32xf32> to vector<1x8x32xf32>
    tpu.vector_store %arg10[%c0_28, %c0_29, %c0_30], %91 {strides = array<i32>} : memref<1x8x32xf32, #tpu.memory_space<vmem>>, vector<1x8x32xf32>,
    return
  }
  func.func @transform_0(%arg0: i32, %arg1: i32) -> (i32, i32, i32) {
    %c0_i32 = arith.constant 0 : i32
    %c0_i32_0 = arith.constant 0 : i32
    %c0_i32_1 = arith.constant 0 : i32
    return %arg0, %c0_i32, %c0_i32_0 : i32, i32, i32
  }
  func.func @transform_1(%arg0: i32, %arg1: i32) -> (i32, i32, i32) {
    %c0_i32 = arith.constant 0 : i32
    %c0_i32_0 = arith.constant 0 : i32
    return %arg0, %arg1, %c0_i32 : i32, i32, i32
  }
  func.func @transform_2(%arg0: i32, %arg1: i32) -> (i32, i32) {
    %c0_i32 = arith.constant 0 : i32
    %c0_i32_0 = arith.constant 0 : i32
    %c0_i32_1 = arith.constant 0 : i32
    return %c0_i32, %c0_i32_0 : i32, i32
  }
  func.func @transform_3(%arg0: i32, %arg1: i32) -> (i32, i32) {
    %c0_i32 = arith.constant 0 : i32
    %c0_i32_0 = arith.constant 0 : i32
    %c0_i32_1 = arith.constant 0 : i32
    return %c0_i32, %c0_i32_0 : i32, i32
  }
  func.func @transform_4(%arg0: i32, %arg1: i32) -> (i32, i32) {
    %c0_i32 = arith.constant 0 : i32
    %c0_i32_0 = arith.constant 0 : i32
    %c0_i32_1 = arith.constant 0 : i32
    return %c0_i32, %c0_i32_0 : i32, i32
  }
  func.func @transform_5(%arg0: i32, %arg1: i32) -> (i32, i32) {
    %c0_i32 = arith.constant 0 : i32
    %c0_i32_0 = arith.constant 0 : i32
    %c0_i32_1 = arith.constant 0 : i32
    return %c0_i32, %c0_i32_0 : i32, i32
  }
  func.func @transform_6(%arg0: i32, %arg1: i32) -> (i32, i32) {
    %c0_i32 = arith.constant 0 : i32
    %c0_i32_0 = arith.constant 0 : i32
    %c0_i32_1 = arith.constant 0 : i32
    return %c0_i32, %c0_i32_0 : i32, i32
  }
  func.func @transform_7(%arg0: i32, %arg1: i32) -> (i32, i32) {
    %c0_i32 = arith.constant 0 : i32
    %c0_i32_0 = arith.constant 0 : i32
    %c0_i32_1 = arith.constant 0 : i32
    return %c0_i32, %c0_i32_0 : i32, i32
  }
  func.func @transform_8(%arg0: i32, %arg1: i32) -> (i32, i32, i32) {
    %c0_i32 = arith.constant 0 : i32
    %c0_i32_0 = arith.constant 0 : i32
    return %arg0, %arg1, %c0_i32 : i32, i32, i32
  }
}

</mosaic_0001>

<llo_original>
// kernel: tpu_custom_call.1
$region0: #{tpu_custom_call.1}
  #allocation0 [shape = 'u32[]', space=smem, size = 0x4, offset = 0x4, fixed_abs, tag = 'smem constant byte address 0x4 - core index']
  #allocation1 [shape = 'u32[72,128]{1,0:T(1,128)}', space=vmem, size = 0x9000, scoped, tag = 'internal scratch']
  %s0 = inlined_call_operand.hbm [shape: f32[2,8,32], index: 0, kind: input, shape index: {}]
  %s1 = inlined_call_operand.hbm [shape: f32[2,8,8], index: 1, kind: input, shape index: {}]
  %s2 = inlined_call_operand.hbm [shape: f32[32,32], index: 2, kind: input, shape index: {}]
  %s3 = inlined_call_operand.vmem [shape: f32[1,32], index: 3, kind: input, shape index: {}]
  %s4 = inlined_call_operand.hbm [shape: f32[32,64], index: 4, kind: input, shape index: {}]
  %s5 = inlined_call_operand.vmem [shape: f32[1,64], index: 5, kind: input, shape index: {}]
  %s6 = inlined_call_operand.hbm [shape: f32[32,32], index: 6, kind: input, shape index: {}]
  %s7 = inlined_call_operand.vmem [shape: f32[1,32], index: 7, kind: input, shape index: {}]
  %s8 = inlined_call_operand.hbm [shape: f32[2,8,32], index: 8, kind: output, shape index: {}]
  %s9 = sld [smem:[#allocation0]]
  $region85: #{tpu_custom_call.1} parent=0
    _
  %s11 = ssub.s32 1, %s9
  %s12 = scalar_select 0, %s11, %s9
  $region1: #{tpu_custom_call.1} parent=0
    #allocation2 [shape = 'u8[8192]{0}', space=vmem, size = 0x2000, scoped, tag = 'input window, operand 0']
    #allocation3 [shape = 's32[2]{0}', space=sflag, size = 0x8, scoped, tag = 'scoped memory for tpu_custom_call.1']
    #allocation4 [shape = 's32[2]{0}', space=sflag, size = 0x8, scoped, tag = 'scoped memory for tpu_custom_call.1']
    #allocation5 [shape = 'u8[8192]{0}', space=vmem, size = 0x2000, scoped, tag = 'input window, operand 1']
    #allocation6 [shape = 's32[2]{0}', space=sflag, size = 0x8, scoped, tag = 'scoped memory for tpu_custom_call.1']
    #allocation7 [shape = 'u8[16384]{0}', space=vmem, size = 0x4000, scoped, tag = 'input window, operand 2, single buffered']
    #allocation8 [shape = 'u8[16384]{0}', space=vmem, size = 0x4000, scoped, tag = 'input window, operand 4, single buffered']
    #allocation9 [shape = 's32[1]{0}', space=sflag, size = 0x4, scoped, tag = 'scoped memory for tpu_custom_call.1']
    #allocation10 [shape = 'u8[16384]{0}', space=vmem, size = 0x4000, scoped, tag = 'input window, operand 6, single buffered']
    #allocation11 [shape = 'u8[8192]{0}', space=vmem, size = 0x2000, scoped, tag = 'output window, operand 0']
    %13 = vsyncpa [#allocation3], 0
    %s14 = scalar_lea.sflag [#allocation3], 1
    %15 = vsyncpa %s14, 0
    %16 = vsyncpa [#allocation6], 0
    %s17 = scalar_lea.sflag [#allocation6], 1
    %18 = vsyncpa %s17, 0
    %19 = vsyncpa [#allocation9], 0
    %20 = vsyncpa [#allocation4], 0
    %s21 = scalar_lea.sflag [#allocation4], 1
    %22 = vsyncpa %s21, 0
    loop: start=0, step=1, limit=4
    $region2: #{tpu_custom_call.1} parent=1 // loop_pre_header
      _
    $region3: #{tpu_custom_call.1} parent=1 // loop_header
      %s24 = sphi 0, %s28
      %p25 = scmp.ge.s32.totalorder %s24, 4
      %s31 = sphi 0, %s43
      %s32 = sphi 0, %s39
      %s33 = sphi 0, %s31
      %s34 = sphi 0, %s32
      %s35 = sphi 0, %s33
      %s36 = sphi 0, %s34
      %s46 = sphi 0, %s48
      %s49 = sphi 0, %s46
      %s50 = sphi 0, %s49
      %s66 = sphi 0, %s50
      %s74 = sphi 0, %s76
      %s77 = sphi 0, %s74
      %s78 = sphi 0, %s77
      %s94 = sphi 0, %s78
      %s98 = sphi 0, %s98
      %s100 = sphi 0, %s98
      %s101 = sphi 0, %s100
      %s115 = sphi 0, %s101
      %s119 = sphi 0, %s119
      %s121 = sphi 0, %s119
      %s122 = sphi 0, %s121
      %s136 = sphi 0, %s122
      %s140 = sphi 0, %s140
      %s142 = sphi 0, %s140
      %s143 = sphi 0, %s142
      %s157 = sphi 0, %s143
      %s161 = sphi 0, %s161
      %s163 = sphi 0, %s161
      %s164 = sphi 0, %s163
      %s178 = sphi 0, %s164
      %s182 = sphi 0, %s182
      %s184 = sphi 0, %s182
      %s185 = sphi 0, %s184
      %s199 = sphi 0, %s185
      %s203 = sphi 0, %s203
      %s205 = sphi 0, %s203
      %s206 = sphi 0, %s205
      %s220 = sphi 0, %s206
      %s228 = sphi 0, %s230
      %s231 = sphi 0, %s228
      %s232 = sphi 0, %s231
      %s248 = sphi 0, %s232
    $region4: #{tpu_custom_call.1} parent=1 // loop_header_branch
      %27 = sbr.rel (%p25) target = $region8
    $region5: #{tpu_custom_call.1} parent=1 // loop_body
      %s29 = ssub.s32 %s24, 1
      %s30 = ssub.s32 %s24, 2
      %s37 = sadd.s32 1, %s32
      %p38 = scmp.ge.s32.totalorder %s37, 1
      %s39 = scalar_select %p38, 0, %s37
      %s40 = sadd.s32 1, %s31
      %s41 = scalar_select %p38, %s40, %s31
      %p42 = scmp.ge.s32.totalorder %s41, 2
      %s43 = scalar_select %p42, 0, %s41
      %s44 = ssub.s32 %s31, %s43
      %p45 = scmp.eq.s32.totalorder %s44, 0
      %s47 = sadd.s32 %s46, 1
      %s48 = scalar_select %p45, %s46, %s47
      %p51 = pneg %p45
      %p52 = scmp.eq.s32.totalorder %s24, 1
      %p53 = por %p51, %p52
      %p54 = scmp.ne.s32.totalorder %s46, %s49
      %p55 = scmp.eq.s32.totalorder %s24, 0
      %p56 = por %p54, %p55
      %p57 = scmp.ne.s32.totalorder %s46, %s49
      %p58 = scmp.eq.s32.totalorder %s29, 1
      %p59 = por %p57, %p58
      %p60 = scmp.ne.s32.totalorder %s49, %s50
      %p61 = scmp.eq.s32.totalorder %s29, 0
      %p62 = por %p60, %p61
      %p63 = scmp.ne.s32.totalorder %s49, %s50
      %p64 = scmp.eq.s32.totalorder %s30, 1
      %p65 = por %p63, %p64
      %p67 = scmp.ne.s32.totalorder %s50, %s66
      %p68 = scmp.eq.s32.totalorder %s30, 0
      %p69 = por %p67, %p68
      %s70 = ssub.s32 %s31, %s43
      %s71 = ssub.s32 %s32, %s39
      %s72 = sor.u32 %s70, %s71
      %p73 = scmp.eq.s32.totalorder %s72, 0
      %s75 = sadd.s32 %s74, 1
      %s76 = scalar_select %p73, %s74, %s75
      %p79 = pneg %p73
      %p80 = scmp.eq.s32.totalorder %s24, 1
      %p81 = por %p79, %p80
      %p82 = scmp.ne.s32.totalorder %s74, %s77
      %p83 = scmp.eq.s32.totalorder %s24, 0
      %p84 = por %p82, %p83
      %p85 = scmp.ne.s32.totalorder %s74, %s77
      %p86 = scmp.eq.s32.totalorder %s29, 1
      %p87 = por %p85, %p86
      %p88 = scmp.ne.s32.totalorder %s77, %s78
      %p89 = scmp.eq.s32.totalorder %s29, 0
      %p90 = por %p88, %p89
      %p91 = scmp.ne.s32.totalorder %s77, %s78
      %p92 = scmp.eq.s32.totalorder %s30, 1
      %p93 = por %p91, %p92
      %p95 = scmp.ne.s32.totalorder %s78, %s94
      %p96 = scmp.eq.s32.totalorder %s30, 0
      %p97 = por %p95, %p96
      %s99 = sadd.s32 %s98, 1
      %p102 = scmp.eq.s32.totalorder %s24, 1
      %p103 = scmp.ne.s32.totalorder %s98, %s100
      %p104 = scmp.eq.s32.totalorder %s24, 0
      %p105 = por %p103, %p104
      %p106 = scmp.ne.s32.totalorder %s98, %s100
      %p107 = scmp.eq.s32.totalorder %s29, 1
      %p108 = por %p106, %p107
      %p109 = scmp.ne.s32.totalorder %s100, %s101
      %p110 = scmp.eq.s32.totalorder %s29, 0
      %p111 = por %p109, %p110
      %p112 = scmp.ne.s32.totalorder %s100, %s101
      %p113 = scmp.eq.s32.totalorder %s30, 1
      %p114 = por %p112, %p113
      %p116 = scmp.ne.s32.totalorder %s101, %s115
      %p117 = scmp.eq.s32.totalorder %s30, 0
      %p118 = por %p116, %p117
      %s120 = sadd.s32 %s119, 1
      %p123 = scmp.eq.s32.totalorder %s24, 1
      %p124 = scmp.ne.s32.totalorder %s119, %s121
      %p125 = scmp.eq.s32.totalorder %s24, 0
      %p126 = por %p124, %p125
      %p127 = scmp.ne.s32.totalorder %s119, %s121
      %p128 = scmp.eq.s32.totalorder %s29, 1
      %p129 = por %p127, %p128
      %p130 = scmp.ne.s32.totalorder %s121, %s122
      %p131 = scmp.eq.s32.totalorder %s29, 0
      %p132 = por %p130, %p131
      %p133 = scmp.ne.s32.totalorder %s121, %s122
      %p134 = scmp.eq.s32.totalorder %s30, 1
      %p135 = por %p133, %p134
      %p137 = scmp.ne.s32.totalorder %s122, %s136
      %p138 = scmp.eq.s32.totalorder %s30, 0
      %p139 = por %p137, %p138
      %s141 = sadd.s32 %s140, 1
      %p144 = scmp.eq.s32.totalorder %s24, 1
      %p145 = scmp.ne.s32.totalorder %s140, %s142
      %p146 = scmp.eq.s32.totalorder %s24, 0
      %p147 = por %p145, %p146
      %p148 = scmp.ne.s32.totalorder %s140, %s142
      %p149 = scmp.eq.s32.totalorder %s29, 1
      %p150 = por %p148, %p149
      %p151 = scmp.ne.s32.totalorder %s142, %s143
      %p152 = scmp.eq.s32.totalorder %s29, 0
      %p153 = por %p151, %p152
      %p154 = scmp.ne.s32.totalorder %s142, %s143
      %p155 = scmp.eq.s32.totalorder %s30, 1
      %p156 = por %p154, %p155
      %p158 = scmp.ne.s32.totalorder %s143, %s157
      %p159 = scmp.eq.s32.totalorder %s30, 0
      %p160 = por %p158, %p159
      %s162 = sadd.s32 %s161, 1
      %p165 = scmp.eq.s32.totalorder %s24, 1
      %p166 = scmp.ne.s32.totalorder %s161, %s163
      %p167 = scmp.eq.s32.totalorder %s24, 0
      %p168 = por %p166, %p167
      %p169 = scmp.ne.s32.totalorder %s161, %s163
      %p170 = scmp.eq.s32.totalorder %s29, 1
      %p171 = por %p169, %p170
      %p172 = scmp.ne.s32.totalorder %s163, %s164
      %p173 = scmp.eq.s32.totalorder %s29, 0
      %p174 = por %p172, %p173
      %p175 = scmp.ne.s32.totalorder %s163, %s164
      %p176 = scmp.eq.s32.totalorder %s30, 1
      %p177 = por %p175, %p176
      %p179 = scmp.ne.s32.totalorder %s164, %s178
      %p180 = scmp.eq.s32.totalorder %s30, 0
      %p181 = por %p179, %p180
      %s183 = sadd.s32 %s182, 1
      %p186 = scmp.eq.s32.totalorder %s24, 1
      %p187 = scmp.ne.s32.totalorder %s182, %s184
      %p188 = scmp.eq.s32.totalorder %s24, 0
      %p189 = por %p187, %p188
      %p190 = scmp.ne.s32.totalorder %s182, %s184
      %p191 = scmp.eq.s32.totalorder %s29, 1
      %p192 = por %p190, %p191
      %p193 = scmp.ne.s32.totalorder %s184, %s185
      %p194 = scmp.eq.s32.totalorder %s29, 0
      %p195 = por %p193, %p194
      %p196 = scmp.ne.s32.totalorder %s184, %s185
      %p197 = scmp.eq.s32.totalorder %s30, 1
      %p198 = por %p196, %p197
      %p200 = scmp.ne.s32.totalorder %s185, %s199
      %p201 = scmp.eq.s32.totalorder %s30, 0
      %p202 = por %p200, %p201
      %s204 = sadd.s32 %s203, 1
      %p207 = scmp.eq.s32.totalorder %s24, 1
      %p208 = scmp.ne.s32.totalorder %s203, %s205
      %p209 = scmp.eq.s32.totalorder %s24, 0
      %p210 = por %p208, %p209
      %p211 = scmp.ne.s32.totalorder %s203, %s205
      %p212 = scmp.eq.s32.totalorder %s29, 1
      %p213 = por %p211, %p212
      %p214 = scmp.ne.s32.totalorder %s205, %s206
      %p215 = scmp.eq.s32.totalorder %s29, 0
      %p216 = por %p214, %p215
      %p217 = scmp.ne.s32.totalorder %s205, %s206
      %p218 = scmp.eq.s32.totalorder %s30, 1
      %p219 = por %p217, %p218
      %p221 = scmp.ne.s32.totalorder %s206, %s220
      %p222 = scmp.eq.s32.totalorder %s30, 0
      %p223 = por %p221, %p222
      %s224 = ssub.s32 %s31, %s43
      %s225 = ssub.s32 %s32, %s39
      %s226 = sor.u32 %s224, %s225
      %p227 = scmp.eq.s32.totalorder %s226, 0
      %s229 = sadd.s32 %s228, 1
      %s230 = scalar_select %p227, %s228, %s229
      %p233 = pneg %p227
      %p234 = scmp.eq.s32.totalorder %s24, 1
      %p235 = por %p233, %p234
      %p236 = scmp.ne.s32.totalorder %s228, %s231
      %p237 = scmp.eq.s32.totalorder %s24, 0
      %p238 = por %p236, %p237
      %p239 = scmp.ne.s32.totalorder %s228, %s231
      %p240 = scmp.eq.s32.totalorder %s29, 1
      %p241 = por %p239, %p240
      %p242 = scmp.ne.s32.totalorder %s231, %s232
      %p243 = scmp.eq.s32.totalorder %s29, 0
      %p244 = por %p242, %p243
      %p245 = scmp.ne.s32.totalorder %s231, %s232
      %p246 = scmp.eq.s32.totalorder %s30, 1
      %p247 = por %p245, %p246
      %p249 = scmp.ne.s32.totalorder %s232, %s248
      %p250 = scmp.eq.s32.totalorder %s30, 0
      %p251 = por %p249, %p250
      %p252 = scmp.le.s32.totalorder 1, %s24
      %p253 = scmp.lt.s32.totalorder %s24, 3
      %p254 = pnand %p252, %p253
      %p255 = pneg %p254
      // Predicated region
      $region9: #{tpu_custom_call.1} parent=5 // pred_check
        _
      $region10: #{tpu_custom_call.1} parent=5 // pred_check_branch
        %257 = sbr.rel (%p254) target = $region12
      $region11: #{tpu_custom_call.1} parent=5 // pred_region
        %s258 = ssub.s32 %s24, 1
        // Predicated region
        $region13: #{tpu_custom_call.1} parent=11 // pred_check
          %p259 = pneg %p111
        $region14: #{tpu_custom_call.1} parent=11 // pred_check_branch
          %261 = sbr.rel (%p259) target = $region16
        $region15: #{tpu_custom_call.1} parent=11 // pred_region
          %263 = vsyncadd [#allocation6], 0
          %s264 = sshll.u32 %s2, 4
          %s265 = int_to_ptr.hbm [resolvable:$true] %s264
          %s266 = sshll.u32 [#allocation7], 4
          %s267 = int_to_ptr.vmem [resolvable:$true] %s266
          %272 = dma.hbm_to_vmem [thread:$0]  %s265, 512, %s267, [#allocation6], 128, 128, 8
        $region16: #{tpu_custom_call.1} parent=11 // pred_fallthru
          _
        // Predicated region
        $region17: #{tpu_custom_call.1} parent=11 // pred_check
          %p273 = pneg %p132
        $region18: #{tpu_custom_call.1} parent=11 // pred_check_branch
          %275 = sbr.rel (%p273) target = $region20
        $region19: #{tpu_custom_call.1} parent=11 // pred_region
          _
        $region20: #{tpu_custom_call.1} parent=11 // pred_fallthru
          _
        // Predicated region
        $region21: #{tpu_custom_call.1} parent=11 // pred_check
          %p276 = pneg %p153
        $region22: #{tpu_custom_call.1} parent=11 // pred_check_branch
          %278 = sbr.rel (%p276) target = $region24
        $region23: #{tpu_custom_call.1} parent=11 // pred_region
          %280 = vsyncadd [#allocation9], 0
          %s281 = sshll.u32 %s4, 4
          %s282 = int_to_ptr.hbm [resolvable:$true] %s281
          %s283 = sshll.u32 [#allocation8], 4
          %s284 = int_to_ptr.vmem [resolvable:$true] %s283
          %289 = dma.hbm_to_vmem [thread:$0]  %s282, 512, %s284, [#allocation9], 128, 128, 8
        $region24: #{tpu_custom_call.1} parent=11 // pred_fallthru
          _
        // Predicated region
        $region25: #{tpu_custom_call.1} parent=11 // pred_check
          %p290 = pneg %p174
        $region26: #{tpu_custom_call.1} parent=11 // pred_check_branch
          %292 = sbr.rel (%p290) target = $region28
        $region27: #{tpu_custom_call.1} parent=11 // pred_region
          _
        $region28: #{tpu_custom_call.1} parent=11 // pred_fallthru
          _
        // Predicated region
        $region29: #{tpu_custom_call.1} parent=11 // pred_check
          %p293 = pneg %p195
        $region30: #{tpu_custom_call.1} parent=11 // pred_check_branch
          %295 = sbr.rel (%p293) target = $region32
        $region31: #{tpu_custom_call.1} parent=11 // pred_region
          %297 = vsyncadd [#allocation9], 0
          %s298 = sshll.u32 %s6, 4
          %s299 = int_to_ptr.hbm [resolvable:$true] %s298
          %s300 = sshll.u32 [#allocation10], 4
          %s301 = int_to_ptr.vmem [resolvable:$true] %s300
          %306 = dma.hbm_to_vmem [thread:$0]  %s299, 512, %s301, [#allocation9], 128, 128, 8
        $region32: #{tpu_custom_call.1} parent=11 // pred_fallthru
          _
        // Predicated region
        $region33: #{tpu_custom_call.1} parent=11 // pred_check
          %p307 = pneg %p216
        $region34: #{tpu_custom_call.1} parent=11 // pred_check_branch
          %309 = sbr.rel (%p307) target = $region36
        $region35: #{tpu_custom_call.1} parent=11 // pred_region
          _
        $region36: #{tpu_custom_call.1} parent=11 // pred_fallthru
          _
      $region12: #{tpu_custom_call.1} parent=5 // pred_fallthru
        _
      %p310 = scmp.lt.s32.totalorder %s24, 2
      // Predicated region
      $region37: #{tpu_custom_call.1} parent=5 // pred_check
        %p311 = pneg %p310
      $region38: #{tpu_custom_call.1} parent=5 // pred_check_branch
        %313 = sbr.rel (%p311) target = $region40
      $region39: #{tpu_custom_call.1} parent=5 // pred_region
        // Predicated region
        $region41: #{tpu_custom_call.1} parent=39 // pred_check
          %p314 = pneg %p56
        $region42: #{tpu_custom_call.1} parent=39 // pred_check_branch
          %316 = sbr.rel (%p314) target = $region44
        $region43: #{tpu_custom_call.1} parent=39 // pred_region
          %s317 = sand.u32 %s46, 1
          %s318 = scalar_lea.sflag [#allocation3], %s317
          %s319 = sand.u32 %s46, 1
          %s320 = smul.addr %s319, 8
          %s321 = scalar_lea.vmem [#allocation2], %s320
          %323 = vsyncadd %s318, 0
          %s324 = smul.addr %s31, 8
          %s325 = scalar_lea.hbm %s0, %s324
          %s327 = sshll.u32 %s325, 4
          %s328 = int_to_ptr.hbm [resolvable:$true] %s327
          %s329 = sshll.u32 %s321, 4
          %s330 = int_to_ptr.vmem [resolvable:$true] %s329
          %332 = dma.hbm_to_vmem [thread:$0]  %s328, 128, %s330, %s318
        $region44: #{tpu_custom_call.1} parent=39 // pred_fallthru
          _
        // Predicated region
        $region45: #{tpu_custom_call.1} parent=39 // pred_check
          %p333 = pneg %p84
        $region46: #{tpu_custom_call.1} parent=39 // pred_check_branch
          %335 = sbr.rel (%p333) target = $region48
        $region47: #{tpu_custom_call.1} parent=39 // pred_region
          %s336 = sand.u32 %s24, 1
          %s337 = scalar_lea.sflag [#allocation6], %s336
          %s338 = sand.u32 %s74, 1
          %s339 = smul.addr %s338, 8
          %s340 = scalar_lea.vmem [#allocation5], %s339
          %342 = vsyncadd %s337, 0
          %s343 = sadd.s32 %s32, %s31
          %s344 = smul.addr %s343, 8
          %s345 = scalar_lea.hbm %s1, %s344
          %s347 = sshll.u32 %s345, 4
          %s348 = int_to_ptr.hbm [resolvable:$true] %s347
          %s349 = sshll.u32 %s340, 4
          %s350 = int_to_ptr.vmem [resolvable:$true] %s349
          %352 = dma.hbm_to_vmem [thread:$0]  %s348, 128, %s350, %s337
        $region48: #{tpu_custom_call.1} parent=39 // pred_fallthru
          _
      $region40: #{tpu_custom_call.1} parent=5 // pred_fallthru
        _
      %p353 = scmp.le.s32.totalorder 1, %s24
      %p354 = scmp.lt.s32.totalorder %s24, 3
      %p355 = pnand %p353, %p354
      %p356 = pneg %p355
      // Predicated region
      $region49: #{tpu_custom_call.1} parent=5 // pred_check
        _
      $region50: #{tpu_custom_call.1} parent=5 // pred_check_branch
        %358 = sbr.rel (%p355) target = $region52
      $region51: #{tpu_custom_call.1} parent=5 // pred_region
        %s359 = ssub.s32 %s24, 1
        %s360 = sand.u32 %s49, 1
        %s361 = scalar_lea.sflag [#allocation3], %s360
        %s362 = sand.u32 %s49, 1
        %s363 = smul.addr %s362, 8
        %s364 = scalar_lea.vmem [#allocation2], %s363
        // Predicated region
        $region53: #{tpu_custom_call.1} parent=51 // pred_check
          %p365 = pneg %p62
        $region54: #{tpu_custom_call.1} parent=51 // pred_check_branch
          %367 = sbr.rel (%p365) target = $region56
        $region55: #{tpu_custom_call.1} parent=51 // pred_region
          %369 = dma.done %s361, 128
        $region56: #{tpu_custom_call.1} parent=51 // pred_fallthru
          _
        %s370 = sand.u32 %s29, 1
        %s371 = scalar_lea.sflag [#allocation6], %s370
        %s372 = sand.u32 %s77, 1
        %s373 = smul.addr %s372, 8
        %s374 = scalar_lea.vmem [#allocation5], %s373
        // Predicated region
        $region57: #{tpu_custom_call.1} parent=51 // pred_check
          %p375 = pneg %p90
        $region58: #{tpu_custom_call.1} parent=51 // pred_check_branch
          %377 = sbr.rel (%p375) target = $region60
        $region59: #{tpu_custom_call.1} parent=51 // pred_region
          %379 = dma.done %s371, 128
        $region60: #{tpu_custom_call.1} parent=51 // pred_fallthru
          _
        // Predicated region
        $region61: #{tpu_custom_call.1} parent=51 // pred_check
          %p380 = pneg %p111
        $region62: #{tpu_custom_call.1} parent=51 // pred_check_branch
          %382 = sbr.rel (%p380) target = $region64
        $region63: #{tpu_custom_call.1} parent=51 // pred_region
          %384 = dma.done [#allocation6], 512
        $region64: #{tpu_custom_call.1} parent=51 // pred_fallthru
          _
        // Predicated region
        $region65: #{tpu_custom_call.1} parent=51 // pred_check
          %p385 = pneg %p153
        $region66: #{tpu_custom_call.1} parent=51 // pred_check_branch
          %387 = sbr.rel (%p385) target = $region68
        $region67: #{tpu_custom_call.1} parent=51 // pred_region
          %389 = dma.done [#allocation9], 512
        $region68: #{tpu_custom_call.1} parent=51 // pred_fallthru
          _
        // Predicated region
        $region69: #{tpu_custom_call.1} parent=51 // pred_check
          %p390 = pneg %p195
        $region70: #{tpu_custom_call.1} parent=51 // pred_check_branch
          %392 = sbr.rel (%p390) target = $region72
        $region71: #{tpu_custom_call.1} parent=51 // pred_region
          %394 = dma.done [#allocation9], 512
        $region72: #{tpu_custom_call.1} parent=51 // pred_fallthru
          _
        %s395 = sand.u32 %s49, 1
        %s396 = scalar_lea.sflag [#allocation3], %s395
        %s397 = sand.u32 %s49, 1
        %s398 = smul.addr %s397, 8
        %s399 = scalar_lea.vmem [#allocation2], %s398
        %p400 = pneg %p62
        %p401 = pneg %p59
        %s402 = sand.u32 %s29, 1
        %s403 = scalar_lea.sflag [#allocation6], %s402
        %s404 = sand.u32 %s77, 1
        %s405 = smul.addr %s404, 8
        %s406 = scalar_lea.vmem [#allocation5], %s405
        %p407 = pneg %p90
        %p408 = pneg %p87
        %p409 = pneg %p111
        %p410 = pneg %p108
        %p411 = pneg %p132
        %p412 = pneg %p129
        %p413 = pneg %p153
        %p414 = pneg %p150
        %p415 = pneg %p174
        %p416 = pneg %p171
        %p417 = pneg %p195
        %p418 = pneg %p192
        %p419 = pneg %p216
        %p420 = pneg %p213
        %p421 = pneg %p244
        %p422 = pneg %p241
        %s423 = sand.u32 %s231, 1
        %s424 = scalar_lea.sflag [#allocation4], %s423
        %s425 = sand.u32 %s231, 1
        %s426 = smul.addr %s425, 8
        %s427 = scalar_lea.vmem [#allocation11], %s426
        %v428 = vld [vmem:[%s364] sm:$0xff]
        %s429 = smul.u32 %s34, 8
        %s430 = scalar_lea.vmem %s364, %s429 [#allocation2]
        %v431 = vld [vmem:[%s430] sm:$0xff]
        %v432 = vld [vmem:[#allocation7] sm:$0xff]
        %v433 = vld [vmem:[#allocation7 + $0x8] sm:$0xff]
        %v434 = vld [vmem:[#allocation7 + $0x10] sm:$0xff]
        %v435 = vld [vmem:[#allocation7 + $0x18] sm:$0xff]
        %v436 = vld [vmem:[%s3] sm:$0x1]
        %v438 = vperm.slane %v436, 0
        %vm440 = vcmask 261120
        %v442 = vsel %vm440, %v431, 0
        %444 = vmatpush.msra.mxu0 0.0
        %445 = vmatpush.msra.mxu0 0.0
        %446 = vmatpush.msra.mxu0 0.0
        %447 = vmatpush.msra.mxu0 0.0
        %448 = vmatpush.msra.mxu0 0.0
        %449 = vmatpush.msra.mxu0 0.0
        %450 = vmatpush.msra.mxu0 0.0
        %451 = vmatpush.msra.mxu0 0.0
        %452 = vmatpush.msra.mxu0 0.0
        %453 = vmatpush.msra.mxu0 0.0
        %454 = vmatpush.msra.mxu0 0.0
        %455 = vmatpush.msra.mxu0 0.0
        %456 = vmatpush.msra.mxu0 %v435
        %457 = vmatpush.msra.mxu0 %v434
        %458 = vmatpush.msra.mxu0 %v433
        %459 = vmatpush.msra.mxu0 %v432
        %460 = vmatmul.f32.gmra.mxu0 %v442
        %v461 = vpop.f32.mrf.mxu0
        %v462 = vadd.f32 %v438, %v461
        %463 = vdwg.mxu0
        %v464 = vld [vmem:[#allocation8] sm:$0xff]
        %v465 = vld [vmem:[#allocation8 + $0x8] sm:$0xff]
        %v466 = vld [vmem:[#allocation8 + $0x10] sm:$0xff]
        %v467 = vld [vmem:[#allocation8 + $0x18] sm:$0xff]
        %v468 = vld [vmem:[%s5] sm:$0x1]
        %v470 = vperm.slane %v468, 0
        %v473 = vsel %vm440, %v428, 0
        %475 = vmatpush.msra.mxu0 0.0
        %476 = vmatpush.msra.mxu0 0.0
        %477 = vmatpush.msra.mxu0 0.0
        %478 = vmatpush.msra.mxu0 0.0
        %479 = vmatpush.msra.mxu0 0.0
        %480 = vmatpush.msra.mxu0 0.0
        %481 = vmatpush.msra.mxu0 0.0
        %482 = vmatpush.msra.mxu0 0.0
        %483 = vmatpush.msra.mxu0 0.0
        %484 = vmatpush.msra.mxu0 0.0
        %485 = vmatpush.msra.mxu0 0.0
        %486 = vmatpush.msra.mxu0 0.0
        %487 = vmatpush.msra.mxu0 %v467
        %488 = vmatpush.msra.mxu0 %v466
        %489 = vmatpush.msra.mxu0 %v465
        %490 = vmatpush.msra.mxu0 %v464
        %491 = vmatmul.f32.gmra.mxu0 %v473
        %v492 = vpop.f32.mrf.mxu0
        %v493 = vadd.f32 %v470, %v492
        %494 = vdwg.mxu0
        %496 = vrot.lane.b32.xlu0 %v462, 120
        %v497 = vpop.permute.xlu0 %496
        %498 = vrot.lane.b32.xlu0 %v462, 112
        %v499 = vpop.permute.xlu0 %498
        %500 = vrot.lane.b32.xlu0 %v462, 104
        %v501 = vpop.permute.xlu0 %500
        %503 = vrot.lane.b32.xlu0 %v493, 120
        %v504 = vpop.permute.xlu0 %503
        %505 = vrot.lane.b32.xlu0 %v493, 112
        %v506 = vpop.permute.xlu0 %505
        %507 = vrot.lane.b32.xlu0 %v493, 104
        %v508 = vpop.permute.xlu0 %507
        %vm509 = vcmask 64512
        %v510 = vsel %vm509, %v462, 0
        %v512 = vsel %vm509, %v493, 0
        %514 = vmatpush.xpose.msra.mxu0 0.0
        %515 = vmatpush.xpose.msra.mxu0 0.0
        %516 = vmatpush.xpose.msra.mxu0 0.0
        %517 = vmatpush.xpose.msra.mxu0 0.0
        %518 = vmatpush.xpose.msra.mxu0 0.0
        %519 = vmatpush.xpose.msra.mxu0 0.0
        %520 = vmatpush.xpose.msra.mxu0 0.0
        %521 = vmatpush.xpose.msra.mxu0 0.0
        %522 = vmatpush.xpose.msra.mxu0 0.0
        %523 = vmatpush.xpose.msra.mxu0 0.0
        %524 = vmatpush.xpose.msra.mxu0 0.0
        %525 = vmatpush.xpose.msra.mxu0 0.0
        %526 = vmatpush.xpose.msra.mxu0 0.0
        %527 = vmatpush.xpose.msra.mxu0 0.0
        %528 = vmatpush.xpose.msra.mxu0 0.0
        %529 = vmatpush.xpose.msra.mxu0 %v512
        %530 = vmatmul.f32.gmra.mxu0 %v510
        %v531 = vpop.f32.mrf.mxu0
        %v532 = vadd.f32 0.0, %v531
        %533 = vdwg.mxu0
        %v534 = vsel %vm509, %v497, 0
        %v536 = vsel %vm509, %v504, 0
        %538 = vmatpush.xpose.msra.mxu0 0.0
        %539 = vmatpush.xpose.msra.mxu0 0.0
        %540 = vmatpush.xpose.msra.mxu0 0.0
        %541 = vmatpush.xpose.msra.mxu0 0.0
        %542 = vmatpush.xpose.msra.mxu0 0.0
        %543 = vmatpush.xpose.msra.mxu0 0.0
        %544 = vmatpush.xpose.msra.mxu0 0.0
        %545 = vmatpush.xpose.msra.mxu0 0.0
        %546 = vmatpush.xpose.msra.mxu0 0.0
        %547 = vmatpush.xpose.msra.mxu0 0.0
        %548 = vmatpush.xpose.msra.mxu0 0.0
        %549 = vmatpush.xpose.msra.mxu0 0.0
        %550 = vmatpush.xpose.msra.mxu0 0.0
        %551 = vmatpush.xpose.msra.mxu0 0.0
        %552 = vmatpush.xpose.msra.mxu0 0.0
        %553 = vmatpush.xpose.msra.mxu0 %v536
        %554 = vmatmul.f32.gmra.mxu0 %v534
        %v555 = vpop.f32.mrf.mxu0
        %v556 = vadd.f32 0.0, %v555
        %557 = vdwg.mxu0
        %v558 = vsel %vm509, %v499, 0
        %v560 = vsel %vm509, %v506, 0
        %562 = vmatpush.xpose.msra.mxu0 0.0
        %563 = vmatpush.xpose.msra.mxu0 0.0
        %564 = vmatpush.xpose.msra.mxu0 0.0
        %565 = vmatpush.xpose.msra.mxu0 0.0
        %566 = vmatpush.xpose.msra.mxu0 0.0
        %567 = vmatpush.xpose.msra.mxu0 0.0
        %568 = vmatpush.xpose.msra.mxu0 0.0
        %569 = vmatpush.xpose.msra.mxu0 0.0
        %570 = vmatpush.xpose.msra.mxu0 0.0
        %571 = vmatpush.xpose.msra.mxu0 0.0
        %572 = vmatpush.xpose.msra.mxu0 0.0
        %573 = vmatpush.xpose.msra.mxu0 0.0
        %574 = vmatpush.xpose.msra.mxu0 0.0
        %575 = vmatpush.xpose.msra.mxu0 0.0
        %576 = vmatpush.xpose.msra.mxu0 0.0
        %577 = vmatpush.xpose.msra.mxu0 %v560
        %578 = vmatmul.f32.gmra.mxu0 %v558
        %v579 = vpop.f32.mrf.mxu0
        %v580 = vadd.f32 0.0, %v579
        %581 = vdwg.mxu0
        %v582 = vsel %vm509, %v501, 0
        %v584 = vsel %vm509, %v508, 0
        %586 = vmatpush.xpose.msra.mxu0 0.0
        %587 = vmatpush.xpose.msra.mxu0 0.0
        %588 = vmatpush.xpose.msra.mxu0 0.0
        %589 = vmatpush.xpose.msra.mxu0 0.0
        %590 = vmatpush.xpose.msra.mxu0 0.0
        %591 = vmatpush.xpose.msra.mxu0 0.0
        %592 = vmatpush.xpose.msra.mxu0 0.0
        %593 = vmatpush.xpose.msra.mxu0 0.0
        %594 = vmatpush.xpose.msra.mxu0 0.0
        %595 = vmatpush.xpose.msra.mxu0 0.0
        %596 = vmatpush.xpose.msra.mxu0 0.0
        %597 = vmatpush.xpose.msra.mxu0 0.0
        %598 = vmatpush.xpose.msra.mxu0 0.0
        %599 = vmatpush.xpose.msra.mxu0 0.0
        %600 = vmatpush.xpose.msra.mxu0 0.0
        %601 = vmatpush.xpose.msra.mxu0 %v584
        %602 = vmatmul.f32.gmra.mxu0 %v582
        %v603 = vpop.f32.mrf.mxu0
        %v604 = vadd.f32 0.0, %v603
        %605 = vdwg.mxu0
        %v606 = vmul.f32 %v532, 0.35355338
        %v607 = vmul.f32 %v556, 0.35355338
        %v608 = vmul.f32 %v580, 0.35355338
        %v609 = vmul.f32 %v604, 0.35355338
        %v610 = vld [vmem:[%s374] sm:$0xff]
        %vm611 = vcmp.eq.f32.partialorder %v610, 1.0
        %v612 = vsel %vm611, 1, 0
        %vm613 = vcmp.eq.s32.totalorder %v612, 1
        %v614 = vsel %vm613, -1e+09, %v606
        %v615 = vsel %vm613, -1e+09, %v607
        %v616 = vsel %vm613, -1e+09, %v608
        %v617 = vsel %vm613, -1e+09, %v609
        %v618 = vsel %vm509, %v614, -inf
        %619 = vmax.xlane.f32.xlu0 %v618
        %v620 = vpop.xlane.xlu0 %619
        %v621 = vsel %vm509, %v615, -inf
        %622 = vmax.xlane.f32.xlu0 %v621
        %v623 = vpop.xlane.xlu0 %622
        %v624 = vsel %vm509, %v616, -inf
        %625 = vmax.xlane.f32.xlu0 %v624
        %v626 = vpop.xlane.xlu0 %625
        %v627 = vsel %vm509, %v617, -inf
        %628 = vmax.xlane.f32.xlu0 %v627
        %v629 = vpop.xlane.xlu0 %628
        %v630 = vsub.f32 %v614, %v620
        %v631 = vsub.f32 %v615, %v623
        %v632 = vsub.f32 %v616, %v626
        %v633 = vsub.f32 %v617, %v629
        %v634 = vmul.f32 %v630, 1.442695
        %v635 = vpow.pop %v634
        %v636 = vmul.f32 %v631, 1.442695
        %v637 = vpow.pop %v636
        %v638 = vmul.f32 %v632, 1.442695
        %v639 = vpow.pop %v638
        %v640 = vmul.f32 %v633, 1.442695
        %v641 = vpow.pop %v640
        %v642 = vsel %vm509, %v635, 0.0
        %643 = vadd.xlane.f32.xlu0 %v642
        %v644 = vpop.xlane.xlu0 %643
        %v645 = vsel %vm509, %v637, 0.0
        %646 = vadd.xlane.f32.xlu0 %v645
        %v647 = vpop.xlane.xlu0 %646
        %v648 = vsel %vm509, %v639, 0.0
        %649 = vadd.xlane.f32.xlu0 %v648
        %v650 = vpop.xlane.xlu0 %649
        %v651 = vsel %vm509, %v641, 0.0
        %652 = vadd.xlane.f32.xlu0 %v651
        %v653 = vpop.xlane.xlu0 %652
        %v654 = vrcp.pop %v644
        %v655 = vmul.f32 %v644, %v654
        %v656 = vsub.f32 1.0, %v655
        %v657 = vmul.f32 %v654, %v656
        %v658 = vadd.f32 %v654, %v657
        %vm659 = vweird.f32 %v644
        %vm660 = vweird.f32 %v654
        %vm661 = vmor %vm659, %vm660
        %v662 = vsel %vm661, %v654, %v658
        %v663 = vand.u32 2147483647, %v644
        %vm664 = vcmp.eq.f32.partialorder %v663, 8.507059e+37
        %v665 = vand.u32 %v644, 2147483648
        %v666 = vor.u32 1.1754944e-38, %v665
        %v667 = vsel %vm664, %v666, %v662
        %v668 = vrcp.pop %v647
        %v669 = vmul.f32 %v647, %v668
        %v670 = vsub.f32 1.0, %v669
        %v671 = vmul.f32 %v668, %v670
        %v672 = vadd.f32 %v668, %v671
        %vm673 = vweird.f32 %v647
        %vm674 = vweird.f32 %v668
        %vm675 = vmor %vm673, %vm674
        %v676 = vsel %vm675, %v668, %v672
        %v677 = vand.u32 2147483647, %v647
        %vm678 = vcmp.eq.f32.partialorder %v677, 8.507059e+37
        %v679 = vand.u32 %v647, 2147483648
        %v680 = vor.u32 1.1754944e-38, %v679
        %v681 = vsel %vm678, %v680, %v676
        %v682 = vrcp.pop %v650
        %v683 = vmul.f32 %v650, %v682
        %v684 = vsub.f32 1.0, %v683
        %v685 = vmul.f32 %v682, %v684
        %v686 = vadd.f32 %v682, %v685
        %vm687 = vweird.f32 %v650
        %vm688 = vweird.f32 %v682
        %vm689 = vmor %vm687, %vm688
        %v690 = vsel %vm689, %v682, %v686
        %v691 = vand.u32 2147483647, %v650
        %vm692 = vcmp.eq.f32.partialorder %v691, 8.507059e+37
        %v693 = vand.u32 %v650, 2147483648
        %v694 = vor.u32 1.1754944e-38, %v693
        %v695 = vsel %vm692, %v694, %v690
        %v696 = vrcp.pop %v653
        %v697 = vmul.f32 %v653, %v696
        %v698 = vsub.f32 1.0, %v697
        %v699 = vmul.f32 %v696, %v698
        %v700 = vadd.f32 %v696, %v699
        %vm701 = vweird.f32 %v653
        %vm702 = vweird.f32 %v696
        %vm703 = vmor %vm701, %vm702
        %v704 = vsel %vm703, %v696, %v700
        %v705 = vand.u32 2147483647, %v653
        %vm706 = vcmp.eq.f32.partialorder %v705, 8.507059e+37
        %v707 = vand.u32 %v653, 2147483648
        %v708 = vor.u32 1.1754944e-38, %v707
        %v709 = vsel %vm706, %v708, %v704
        %v710 = vmul.f32 %v635, %v667
        %v711 = vmul.f32 %v637, %v681
        %v712 = vmul.f32 %v639, %v695
        %v713 = vmul.f32 %v641, %v709
        %714 = vrot.lane.b32.xlu0 %v493, 96
        %v715 = vpop.permute.xlu0 %714
        %v718 = vsel %vm509, %v710, 0
        %720 = vmatpush.msra.mxu0 0.0
        %721 = vmatpush.msra.mxu0 0.0
        %722 = vmatpush.msra.mxu0 0.0
        %723 = vmatpush.msra.mxu0 0.0
        %724 = vmatpush.msra.mxu0 0.0
        %725 = vmatpush.msra.mxu0 0.0
        %726 = vmatpush.msra.mxu0 0.0
        %727 = vmatpush.msra.mxu0 0.0
        %728 = vmatpush.msra.mxu0 0.0
        %729 = vmatpush.msra.mxu0 0.0
        %730 = vmatpush.msra.mxu0 0.0
        %731 = vmatpush.msra.mxu0 0.0
        %732 = vmatpush.msra.mxu0 0.0
        %733 = vmatpush.msra.mxu0 0.0
        %734 = vmatpush.msra.mxu0 0.0
        %735 = vmatpush.msra.mxu0 %v715
        %736 = vmatmul.f32.gmra.mxu0 %v718
        %v737 = vpop.f32.mrf.mxu0
        %v738 = vadd.f32 0.0, %v737
        %739 = vdwg.mxu0
        %740 = vrot.lane.b32.xlu0 %v504, 96
        %v741 = vpop.permute.xlu0 %740
        %v744 = vsel %vm509, %v711, 0
        %746 = vmatpush.msra.mxu0 0.0
        %747 = vmatpush.msra.mxu0 0.0
        %748 = vmatpush.msra.mxu0 0.0
        %749 = vmatpush.msra.mxu0 0.0
        %750 = vmatpush.msra.mxu0 0.0
        %751 = vmatpush.msra.mxu0 0.0
        %752 = vmatpush.msra.mxu0 0.0
        %753 = vmatpush.msra.mxu0 0.0
        %754 = vmatpush.msra.mxu0 0.0
        %755 = vmatpush.msra.mxu0 0.0
        %756 = vmatpush.msra.mxu0 0.0
        %757 = vmatpush.msra.mxu0 0.0
        %758 = vmatpush.msra.mxu0 0.0
        %759 = vmatpush.msra.mxu0 0.0
        %760 = vmatpush.msra.mxu0 0.0
        %761 = vmatpush.msra.mxu0 %v741
        %762 = vmatmul.f32.gmra.mxu0 %v744
        %v763 = vpop.f32.mrf.mxu0
        %v764 = vadd.f32 0.0, %v763
        %765 = vdwg.mxu0
        %766 = vrot.lane.b32.xlu0 %v506, 96
        %v767 = vpop.permute.xlu0 %766
        %v770 = vsel %vm509, %v712, 0
        %772 = vmatpush.msra.mxu0 0.0
        %773 = vmatpush.msra.mxu0 0.0
        %774 = vmatpush.msra.mxu0 0.0
        %775 = vmatpush.msra.mxu0 0.0
        %776 = vmatpush.msra.mxu0 0.0
        %777 = vmatpush.msra.mxu0 0.0
        %778 = vmatpush.msra.mxu0 0.0
        %779 = vmatpush.msra.mxu0 0.0
        %780 = vmatpush.msra.mxu0 0.0
        %781 = vmatpush.msra.mxu0 0.0
        %782 = vmatpush.msra.mxu0 0.0
        %783 = vmatpush.msra.mxu0 0.0
        %784 = vmatpush.msra.mxu0 0.0
        %785 = vmatpush.msra.mxu0 0.0
        %786 = vmatpush.msra.mxu0 0.0
        %787 = vmatpush.msra.mxu0 %v767
        %788 = vmatmul.f32.gmra.mxu0 %v770
        %v789 = vpop.f32.mrf.mxu0
        %v790 = vadd.f32 0.0, %v789
        %791 = vdwg.mxu0
        %792 = vrot.lane.b32.xlu0 %v508, 96
        %v793 = vpop.permute.xlu0 %792
        %v796 = vsel %vm509, %v713, 0
        %798 = vmatpush.msra.mxu0 0.0
        %799 = vmatpush.msra.mxu0 0.0
        %800 = vmatpush.msra.mxu0 0.0
        %801 = vmatpush.msra.mxu0 0.0
        %802 = vmatpush.msra.mxu0 0.0
        %803 = vmatpush.msra.mxu0 0.0
        %804 = vmatpush.msra.mxu0 0.0
        %805 = vmatpush.msra.mxu0 0.0
        %806 = vmatpush.msra.mxu0 0.0
        %807 = vmatpush.msra.mxu0 0.0
        %808 = vmatpush.msra.mxu0 0.0
        %809 = vmatpush.msra.mxu0 0.0
        %810 = vmatpush.msra.mxu0 0.0
        %811 = vmatpush.msra.mxu0 0.0
        %812 = vmatpush.msra.mxu0 0.0
        %813 = vmatpush.msra.mxu0 %v793
        %814 = vmatmul.f32.gmra.mxu0 %v796
        %v815 = vpop.f32.mrf.mxu0
        %v816 = vadd.f32 0.0, %v815
        %817 = vdwg.mxu0
        %819 = vrot.lane.b32.xlu0 %v764, 8
        %v820 = vpop.permute.xlu0 %819
        %823 = vrot.lane.b32.xlu0 %v790, 16
        %v824 = vpop.permute.xlu0 %823
        %827 = vrot.lane.b32.xlu0 %v816, 24
        %v828 = vpop.permute.xlu0 %827
        %v830 = vsel %vm509, %v738, %v820
        %vm831 = vcmask 130048
        %v832 = vsel %vm831, %v830, %v824
        %vm833 = vcmask 195584
        %v834 = vsel %vm833, %v832, %v828
        %v835 = vld [vmem:[#allocation10] sm:$0xff]
        %v836 = vld [vmem:[#allocation10 + $0x8] sm:$0xff]
        %v837 = vld [vmem:[#allocation10 + $0x10] sm:$0xff]
        %v838 = vld [vmem:[#allocation10 + $0x18] sm:$0xff]
        %v839 = vld [vmem:[%s7] sm:$0x1]
        %v841 = vperm.slane %v839, 0
        %v844 = vsel %vm440, %v834, 0
        %846 = vmatpush.msra.mxu0 0.0
        %847 = vmatpush.msra.mxu0 0.0
        %848 = vmatpush.msra.mxu0 0.0
        %849 = vmatpush.msra.mxu0 0.0
        %850 = vmatpush.msra.mxu0 0.0
        %851 = vmatpush.msra.mxu0 0.0
        %852 = vmatpush.msra.mxu0 0.0
        %853 = vmatpush.msra.mxu0 0.0
        %854 = vmatpush.msra.mxu0 0.0
        %855 = vmatpush.msra.mxu0 0.0
        %856 = vmatpush.msra.mxu0 0.0
        %857 = vmatpush.msra.mxu0 0.0
        %858 = vmatpush.msra.mxu0 %v838
        %859 = vmatpush.msra.mxu0 %v837
        %860 = vmatpush.msra.mxu0 %v836
        %861 = vmatpush.msra.mxu0 %v835
        %862 = vmatmul.f32.gmra.mxu0 %v844
        %v863 = vpop.f32.mrf.mxu0
        %v864 = vadd.f32 %v841, %v863
        %865 = vdwg.mxu0
        %866 = vst.msk [vmem:[%s427] sm:$0xff] %vm440, %v864
        %s867 = sand.u32 %s231, 1
        %s868 = scalar_lea.sflag [#allocation4], %s867
        %s869 = sand.u32 %s231, 1
        %s870 = smul.addr %s869, 8
        %s871 = scalar_lea.vmem [#allocation11], %s870
        // Predicated region
        $region73: #{tpu_custom_call.1} parent=51 // pred_check
          %p872 = pneg %p241
        $region74: #{tpu_custom_call.1} parent=51 // pred_check_branch
          %874 = sbr.rel (%p872) target = $region76
        $region75: #{tpu_custom_call.1} parent=51 // pred_region
          %876 = vsyncadd %s868, 0
          %s877 = sadd.s32 %s34, %s33
          %s878 = smul.addr %s877, 8
          %s879 = scalar_lea.hbm %s8, %s878
          %s881 = sshll.u32 %s871, 4
          %s882 = int_to_ptr.vmem [resolvable:$true] %s881
          %s883 = sshll.u32 %s879, 4
          %s884 = int_to_ptr.hbm [resolvable:$true] %s883
          %886 = dma.vmem_to_hbm [thread:$0]  %s882, 128, %s884, %s868
        $region76: #{tpu_custom_call.1} parent=51 // pred_fallthru
          _
      $region52: #{tpu_custom_call.1} parent=5 // pred_fallthru
        _
      %p887 = scmp.le.s32.totalorder 2, %s24
      // Predicated region
      $region77: #{tpu_custom_call.1} parent=5 // pred_check
        %p888 = pneg %p887
      $region78: #{tpu_custom_call.1} parent=5 // pred_check_branch
        %890 = sbr.rel (%p888) target = $region80
      $region79: #{tpu_custom_call.1} parent=5 // pred_region
        %s891 = ssub.s32 %s24, 2
        // Predicated region
        $region81: #{tpu_custom_call.1} parent=79 // pred_check
          %p892 = pneg %p247
        $region82: #{tpu_custom_call.1} parent=79 // pred_check_branch
          %894 = sbr.rel (%p892) target = $region84
        $region83: #{tpu_custom_call.1} parent=79 // pred_region
          %s895 = sand.u32 %s232, 1
          %s896 = scalar_lea.sflag [#allocation4], %s895
          %s897 = sand.u32 %s232, 1
          %s898 = smul.addr %s897, 8
          %s899 = scalar_lea.vmem [#allocation11], %s898
          %901 = dma.done %s896, 128
        $region84: #{tpu_custom_call.1} parent=79 // pred_fallthru
          _
      $region80: #{tpu_custom_call.1} parent=5 // pred_fallthru
        _
    $region6: #{tpu_custom_call.1} parent=1 // loop_footer
      %s28 = sadd.s32 1, %s24
    $region7: #{tpu_custom_call.1} parent=1 // loop_footer_branch
      %23 = sbr.rel target = $region3
    $region8: #{tpu_custom_call.1} parent=1 // loop_exit
      _
    %902 = vsyncpa [#allocation3], 1
    %s903 = scalar_lea.sflag [#allocation3], 1
    %904 = vsyncpa %s903, 1
    %905 = vsyncpa [#allocation6], 1
    %s906 = scalar_lea.sflag [#allocation6], 1
    %907 = vsyncpa %s906, 1
    %908 = vsyncpa [#allocation9], 1
    %909 = vsyncpa [#allocation4], 1
    %s910 = scalar_lea.sflag [#allocation4], 1
    %911 = vsyncpa %s910, 1

</llo_original>
